<compile_context>
chip_gen: v7x
topology: tpu7x:2x2x1
jax: 0.10.0
libtpu: 0.0.40
codegen_flags: <defaults>
</compile_context>

<pallas_src>
import numpy as np
import jax
import jax.numpy as jnp
from jax import lax
from jax.experimental import pallas as pl
from jax.experimental.pallas import tpu as pltpu

NUM_QUBITS = 3
DIM = 1 << NUM_QUBITS  # 8

# dot_general dimension numbers for A @ B^T (contract last dim of both operands),
# the same "NT" pattern used by the reference flash-attention TPU kernels.
NT_DIMS = (((1,), (1,)), ((), ()))


# ---------------------------------------------------------------------------
# Host-side deterministic parameter / constant construction (glue)
# ---------------------------------------------------------------------------
def _ry(theta):
    c, s = np.cos(theta / 2.0), np.sin(theta / 2.0)
    return np.array([[c, -s], [s, c]], dtype=np.float64)


def _cx(control, target):
    u = np.zeros((DIM, DIM), dtype=np.float64)
    for k in range(DIM):
        k2 = k ^ (1 << target) if (k >> control) & 1 else k
        u[k2, k] = 1.0
    return u


def build_ansatz_unitary(theta):
    """TwoLocal(3, rotation=['ry'], entanglement='cx' linear, reps=2) -> real 8x8."""
    def rot_layer(t):
        # little-endian statevector: kron(qubit2, qubit1, qubit0)
        return np.kron(_ry(t[2]), np.kron(_ry(t[1]), _ry(t[0])))

    ent = _cx(1, 2) @ _cx(0, 1)  # CX(0,1) applied first
    u = rot_layer(theta[0:3])
    u = ent @ u
    u = rot_layer(theta[3:6]) @ u
    u = ent @ u
    u = rot_layer(theta[6:9]) @ u
    return u


def build_phase_coeffs():
    """C[f, k]: coefficient of feature term f in the diagonal phase of basis k."""
    c = np.zeros((5, DIM), dtype=np.float64)
    for k in range(DIM):
        b0, b1, b2 = k & 1, (k >> 1) & 1, (k >> 2) & 1
        c[0, k] = 2.0 * b0
        c[1, k] = 2.0 * b1
        c[2, k] = 2.0 * b2
        c[3, k] = 2.0 * (b0 ^ b1)
        c[4, k] = 2.0 * (b1 ^ b2)
    return c


def build_parity_matrix():
    """M[k, p] = 1 if parity_mapping(k) == p  (parity = b0 XOR b2 for 3 qubits)."""
    m = np.zeros((DIM, 2), dtype=np.float64)
    for k in range(DIM):
        p = (k & 1) ^ ((k >> 2) & 1)
        m[k, p] = 1.0
    return m


def make_params(num_classes, seed=42):
    # hardware_efficient_init for the 9 ansatz weights
    rng = np.random.RandomState(seed)
    theta = (rng.random_sample(9) - 0.5) * 0.1 * np.pi
    u_ansatz = build_ansatz_unitary(theta)                      # real 8x8, state' = U @ state

    # classifier: xavier_uniform gain=1.4 on (num_classes, 2), bias = 0.1
    rng2 = np.random.RandomState(seed + 1)
    bound = 1.4 * np.sqrt(6.0 / (2 + num_classes))
    w_cls = rng2.uniform(-bound, bound, size=(num_classes, 2))  # torch Linear weight (out, in)
    b_cls = np.full((num_classes,), 0.1)

    c = build_phase_coeffs()                                    # (5, 8)
    m = build_parity_matrix()                                   # (8, 2)

    # host-folded output matrix: parity grouping + classifier + 1/8 normalization,
    # with the classifier bias folded in via unitarity (sum_k probs_k == 8 exactly):
    #   (FT + b/8 * 1_{1x8}) @ probs = FT @ probs + b
    f_fused = (m @ w_cls.T) / float(DIM)                        # (8, num_classes)
    ft_bias = f_fused.T + b_cls[:, None] / float(DIM)           # (num_classes, 8)

    return {
        # --- kernel constants (batch-on-lanes layout, built inside the kernel) ---
        "EYE": jnp.asarray(np.eye(3), jnp.float32),             # (3, 3) MXU transpose helper
        "CTx": jnp.asarray(c[0:3, :].T, jnp.float32),           # (8, 3) linear-term coeffs
        "CTp": jnp.asarray(c[3:5, :].T, jnp.float32),           # (8, 2) ZZ pair-term coeffs
        "U":   jnp.asarray(u_ansatz, jnp.float32),              # (8, 8)
        "FTb": jnp.asarray(ft_bias, jnp.float32),               # (num_classes, 8) fused + bias
        # --- unfused constants for the independent pure-JAX reference ---
        "C":   jnp.asarray(c, jnp.float32),                     # (5, 8)
        "Ut":  jnp.asarray(u_ansatz.T, jnp.float32),            # (8, 8)
        "M":   jnp.asarray(m, jnp.float32),                     # (8, 2)
        "WcT": jnp.asarray(w_cls.T, jnp.float32),               # (2, num_classes)
        "bc":  jnp.asarray(b_cls.reshape(1, num_classes), jnp.float32),
    }


# ---------------------------------------------------------------------------
# Pallas kernel: statevector sim + parity measurement + linear classifier
# Input block is (tb, 3) batch-major (as stored in HBM); everything downstream is
# (rows, batch_tile): batch on lanes, basis states on sublanes (lane-dense vregs).
# ---------------------------------------------------------------------------
def qnn_kernel(x_ref, eye_ref, ctx_ref, ctp_ref, u_ref, ft_ref, o_ref):
    x = x_ref[...]                                    # (tb, 3) batch-major block
    # MXU-side transpose to batch-on-lanes: eye(3,3) contracted against x's feature
    # dim (NT matmul, flash-attn dimension numbers) -> (3, tb). Keeps XLU/VPU free.
    xt = lax.dot_general(eye_ref[...], x, NT_DIMS,
                         preferred_element_type=jnp.float32)    # (3, tb)

    pi = jnp.float32(np.pi)
    # ZZ pair terms: ((pi-x0)(pi-x1), (pi-x1)(pi-x2)) -> (2, tb), lane-dense
    pairs = (pi - xt[0:2, :]) * (pi - xt[1:3, :])

    # diagonal phase per basis state, via MXU: (8,3)@(3,tb) + (8,2)@(2,tb)
    phase = (jnp.dot(ctx_ref[...], xt, preferred_element_type=jnp.float32)
             + jnp.dot(ctp_ref[...], pairs, preferred_element_type=jnp.float32))  # (8, tb)

    # amplitudes after feature map (unnormalized: 1/sqrt(8) folded into FTb),
    # apply the real ansatz unitary, accumulate |amp|^2 one component at a time
    # so fewer (8, tb) f32 temps stay live at large tiles.
    u = u_ref[...]                                    # (8, 8)
    re2 = jnp.dot(u, jnp.cos(phase), preferred_element_type=jnp.float32)
    probs = re2 * re2                                 # (8, tb)
    im2 = jnp.dot(u, jnp.sin(phase), preferred_element_type=jnp.float32)
    probs = probs + im2 * im2                         # measurement probs * 8

    # fused (parity grouping @ classifier / 8  + bias/8) -> (num_classes, tb)
    o_ref[...] = jnp.dot(ft_ref[...], probs, preferred_element_type=jnp.float32)


def _round_up(n, m):
    return ((n + m - 1) // m) * m


def quantum_neural_network(x, params, num_classes, max_batch_tile=8192):
    """Forward pass. x: (B, 3) float32. Returns squeeze((B, num_classes))."""
    b = x.shape[0]
    x = jnp.asarray(x, jnp.float32)

    # 128-aligned lane tile, capped by a VMEM budget (~1.4 KiB of VMEM per sample at
    # tb=8192 -> ~11.5 MiB total incl. double buffers; fits all of v5e/v6e/v7x).
    cap = max(128, (int(max_batch_tile) // 128) * 128)
    if b <= 128:
        tb = b                        # single full-extent block (no alignment needed)
    else:
        # >= 2 grid steps so ("parallel",) can shard batch across v7x's two cores
        tb = min(cap, _round_up(pl.cdiv(b, 2), 128))
    grid = (pl.cdiv(b, tb),)          # ragged last block allowed; no jnp.pad copy

    out_t = pl.pallas_call(
        qnn_kernel,
        out_shape=jax.ShapeDtypeStruct((num_classes, b), jnp.float32),
        grid_spec=pltpu.PrefetchScalarGridSpec(
            num_scalar_prefetch=0,
            grid=grid,
            in_specs=[
                pl.BlockSpec((tb, 3), lambda i: (i, 0)),                # x tile (batch-major)
                pl.BlockSpec((3, 3), lambda i: (0, 0)),                 # eye (const)
                pl.BlockSpec((8, 3), lambda i: (0, 0)),                 # CTx (const)
                pl.BlockSpec((8, 2), lambda i: (0, 0)),                 # CTp (const)
                pl.BlockSpec((8, 8), lambda i: (0, 0)),                 # U   (const)
                pl.BlockSpec((num_classes, 8), lambda i: (0, 0)),       # FTb (const, bias fused)
            ],
            out_specs=pl.BlockSpec((num_classes, tb), lambda i: (0, i)),
        ),
        compiler_params=pltpu.CompilerParams(
            dimension_semantics=("parallel",),      # shard batch grid on v7x megacore
            vmem_limit_bytes=32 * 1024 * 1024,      # headroom for the big batch tiles
        ),
    )(x, params["EYE"], params["CTx"], params["CTp"], params["U"], params["FTb"])

    out = out_t.T                                   # (B, num_classes); only wrapper pass left
    return jnp.squeeze(out)                         # matches torch .squeeze()


# ---------------------------------------------------------------------------
# Pure-JAX reference (original row-major layout, unfused constants)
# ---------------------------------------------------------------------------
def reference(x, params):
    x = jnp.asarray(x, jnp.float32)
    x0, x1, x2 = x[:, 0:1], x[:, 1:2], x[:, 2:3]
    pi = np.pi
    feats = jnp.concatenate(
        [x0, x1, x2, (pi - x0) * (pi - x1), (pi - x1) * (pi - x2)], axis=1)
    phase = feats @ params["C"]
    re = jnp.cos(phase) / np.sqrt(DIM)
    im = jnp.sin(phase) / np.sqrt(DIM)
    re2 = re @ params["Ut"]
    im2 = im @ params["Ut"]
    probs = re2 ** 2 + im2 ** 2
    qout = probs @ params["M"]
    return jnp.squeeze(qout @ params["WcT"] + params["bc"])


if __name__ == "__main__":
    NUM_FEATURES = 3   # fixed by parity_mapping's 3-qubit circuit
    NUM_CLASSES = 2
    BATCH = 8

    params = make_params(NUM_CLASSES, seed=42)

    # small batch: single full-extent block
    key = jax.random.PRNGKey(0)
    x = jax.random.uniform(key, (BATCH, NUM_FEATURES), jnp.float32,
                           minval=0.0, maxval=2.0 * np.pi)
    out = jax.block_until_ready(quantum_neural_network(x, params, NUM_CLASSES))
    ref = reference(x, params)
    np.testing.assert_allclose(np.asarray(out), np.asarray(ref),
                               rtol=1e-4, atol=1e-4)

    # two-step grid with a ragged last block (300 = 256 + 44 valid lanes)
    key2 = jax.random.PRNGKey(1)
    x2 = jax.random.uniform(key2, (300, NUM_FEATURES), jnp.float32,
                            minval=0.0, maxval=2.0 * np.pi)
    out2 = jax.block_until_ready(quantum_neural_network(x2, params, NUM_CLASSES))
    ref2 = reference(x2, params)
    np.testing.assert_allclose(np.asarray(out2), np.asarray(ref2),
                               rtol=1e-4, atol=1e-4)

    # many-step grid with a small forced tile (513 -> grid=(5,), last block 1 row)
    key3 = jax.random.PRNGKey(2)
    x3 = jax.random.uniform(key3, (513, NUM_FEATURES), jnp.float32,
                            minval=0.0, maxval=2.0 * np.pi)
    out3 = jax.block_until_ready(
        quantum_neural_network(x3, params, NUM_CLASSES, max_batch_tile=128))
    ref3 = reference(x3, params)
    np.testing.assert_allclose(np.asarray(out3), np.asarray(ref3),
                               rtol=1e-4, atol=1e-4)

    print("KERNEL_OK")
</pallas_src>

<mosaic_0001>
module attributes {stable_mosaic.version = 11 : i64} {
  func.func @qnn_kernel(%arg0: i32, %arg1: memref<8x3xf32, #tpu.memory_space<vmem>>, %arg2: memref<3x3xf32, #tpu.memory_space<vmem>>, %arg3: memref<8x3xf32, #tpu.memory_space<vmem>>, %arg4: memref<8x2xf32, #tpu.memory_space<vmem>>, %arg5: memref<8x8xf32, #tpu.memory_space<vmem>>, %arg6: memref<2x8xf32, #tpu.memory_space<vmem>>, %arg7: memref<2x8xf32, #tpu.memory_space<vmem>>) attributes {dimension_semantics = [#tpu.dimension_semantics<parallel>], iteration_bounds = array<i64: 1>, scalar_prefetch = 0 : i64, scratch_operands = 0 : i64, tpu.core_type = #tpu.core_type<tc>, window_params = [{transform_indices = @transform_0, window_bounds = array<i64: 8, 3>}, {pipeline_mode = #tpu.pipeline_mode<synchronous>, transform_indices = @transform_1, window_bounds = array<i64: 3, 3>}, {pipeline_mode = #tpu.pipeline_mode<synchronous>, transform_indices = @transform_2, window_bounds = array<i64: 8, 3>}, {pipeline_mode = #tpu.pipeline_mode<synchronous>, transform_indices = @transform_3, window_bounds = array<i64: 8, 2>}, {pipeline_mode = #tpu.pipeline_mode<synchronous>, transform_indices = @transform_4, window_bounds = array<i64: 8, 8>}, {pipeline_mode = #tpu.pipeline_mode<synchronous>, transform_indices = @transform_5, window_bounds = array<i64: 2, 8>}, {transform_indices = @transform_6, window_bounds = array<i64: 2, 8>}]} {
    %c0 = arith.constant 0 : index
    %c0_0 = arith.constant 0 : index
    %0 = vector.load %arg1[%c0, %c0_0] : memref<8x3xf32, #tpu.memory_space<vmem>>, vector<8x3xf32>
    %c0_1 = arith.constant 0 : index
    %c0_2 = arith.constant 0 : index
    %1 = vector.load %arg2[%c0_1, %c0_2] : memref<3x3xf32, #tpu.memory_space<vmem>>, vector<3x3xf32>
    %cst = arith.constant dense<0.000000e+00> : vector<3x8xf32>
    %2 = tpu.matmul %1, %0, %cst {dimension_numbers = #tpu.dot_dimension_numbers<[1], [1], [0], [0], [0, 0, 1, 0], [], []>} : vector<3x3xf32>, vector<8x3xf32>, vector<3x8xf32> -> vector<3x8xf32>
    %3 = vector.extract_strided_slice %2 {offsets = [0, 0], sizes = [2, 8], strides = [1, 1]} : vector<3x8xf32> to vector<2x8xf32>
    %cst_3 = arith.constant 3.14159274 : f32
    %4 = vector.broadcast %cst_3 : f32 to vector<2x8xf32>
    %5 = arith.subf %4, %3 : vector<2x8xf32>
    %6 = vector.extract_strided_slice %2 {offsets = [1, 0], sizes = [2, 8], strides = [1, 1]} : vector<3x8xf32> to vector<2x8xf32>
    %cst_4 = arith.constant 3.14159274 : f32
    %7 = vector.broadcast %cst_4 : f32 to vector<2x8xf32>
    %8 = arith.subf %7, %6 : vector<2x8xf32>
    %9 = arith.mulf %5, %8 : vector<2x8xf32>
    %c0_5 = arith.constant 0 : index
    %c0_6 = arith.constant 0 : index
    %10 = vector.load %arg3[%c0_5, %c0_6] : memref<8x3xf32, #tpu.memory_space<vmem>>, vector<8x3xf32>
    %cst_7 = arith.constant dense<0.000000e+00> : vector<8x8xf32>
    %11 = tpu.matmul %10, %2, %cst_7 {dimension_numbers = #tpu.dot_dimension_numbers<[1], [0], [0], [1], [0, 0, 1, 1], [], []>} : vector<8x3xf32>, vector<3x8xf32>, vector<8x8xf32> -> vector<8x8xf32>
    %c0_8 = arith.constant 0 : index
    %c0_9 = arith.constant 0 : index
    %12 = vector.load %arg4[%c0_8, %c0_9] : memref<8x2xf32, #tpu.memory_space<vmem>>, vector<8x2xf32>
    %cst_10 = arith.constant dense<0.000000e+00> : vector<8x8xf32>
    %13 = tpu.matmul %12, %9, %cst_10 {dimension_numbers = #tpu.dot_dimension_numbers<[1], [0], [0], [1], [0, 0, 1, 1], [], []>} : vector<8x2xf32>, vector<2x8xf32>, vector<8x8xf32> -> vector<8x8xf32>
    %14 = arith.addf %11, %13 : vector<8x8xf32>
    %c0_11 = arith.constant 0 : index
    %c0_12 = arith.constant 0 : index
    %15 = vector.load %arg5[%c0_11, %c0_12] : memref<8x8xf32, #tpu.memory_space<vmem>>, vector<8x8xf32>
    %16 = math.cos %14 : vector<8x8xf32>
    %cst_13 = arith.constant dense<0.000000e+00> : vector<8x8xf32>
    %17 = tpu.matmul %15, %16, %cst_13 {dimension_numbers = #tpu.dot_dimension_numbers<[1], [0], [0], [1], [0, 0, 1, 1], [], []>} : vector<8x8xf32>, vector<8x8xf32>, vector<8x8xf32> -> vector<8x8xf32>
    %18 = arith.mulf %17, %17 : vector<8x8xf32>
    %19 = math.sin %14 : vector<8x8xf32>
    %cst_14 = arith.constant dense<0.000000e+00> : vector<8x8xf32>
    %20 = tpu.matmul %15, %19, %cst_14 {dimension_numbers = #tpu.dot_dimension_numbers<[1], [0], [0], [1], [0, 0, 1, 1], [], []>} : vector<8x8xf32>, vector<8x8xf32>, vector<8x8xf32> -> vector<8x8xf32>
    %21 = arith.mulf %20, %20 : vector<8x8xf32>
    %22 = arith.addf %18, %21 : vector<8x8xf32>
    %c0_15 = arith.constant 0 : index
    %c0_16 = arith.constant 0 : index
    %23 = vector.load %arg6[%c0_15, %c0_16] : memref<2x8xf32, #tpu.memory_space<vmem>>, vector<2x8xf32>
    %cst_17 = arith.constant dense<0.000000e+00> : vector<2x8xf32>
    %24 = tpu.matmul %23, %22, %cst_17 {dimension_numbers = #tpu.dot_dimension_numbers<[1], [0], [0], [1], [0, 0, 1, 1], [], []>} : vector<2x8xf32>, vector<8x8xf32>, vector<2x8xf32> -> vector<2x8xf32>
    %c0_18 = arith.constant 0 : index
    %c0_19 = arith.constant 0 : index
    %25 = vector.load %arg7[%c0_18, %c0_19] : memref<2x8xf32, #tpu.memory_space<vmem>>, vector<2x8xf32>
    tpu.vector_store %arg7[%c0_18, %c0_19], %24 {strides = array<i32>} : memref<2x8xf32, #tpu.memory_space<vmem>>, vector<2x8xf32>,
    return
  }
  func.func @transform_0(%arg0: i32) -> (i32, i32) {
    %c0_i32 = arith.constant 0 : i32
    %c0_i32_0 = arith.constant 0 : i32
    return %arg0, %c0_i32 : i32, i32
  }
  func.func @transform_1(%arg0: i32) -> (i32, i32) {
    %c0_i32 = arith.constant 0 : i32
    %c0_i32_0 = arith.constant 0 : i32
    %c0_i32_1 = arith.constant 0 : i32
    return %c0_i32, %c0_i32_0 : i32, i32
  }
  func.func @transform_2(%arg0: i32) -> (i32, i32) {
    %c0_i32 = arith.constant 0 : i32
    %c0_i32_0 = arith.constant 0 : i32
    %c0_i32_1 = arith.constant 0 : i32
    return %c0_i32, %c0_i32_0 : i32, i32
  }
  func.func @transform_3(%arg0: i32) -> (i32, i32) {
    %c0_i32 = arith.constant 0 : i32
    %c0_i32_0 = arith.constant 0 : i32
    %c0_i32_1 = arith.constant 0 : i32
    return %c0_i32, %c0_i32_0 : i32, i32
  }
  func.func @transform_4(%arg0: i32) -> (i32, i32) {
    %c0_i32 = arith.constant 0 : i32
    %c0_i32_0 = arith.constant 0 : i32
    %c0_i32_1 = arith.constant 0 : i32
    return %c0_i32, %c0_i32_0 : i32, i32
  }
  func.func @transform_5(%arg0: i32) -> (i32, i32) {
    %c0_i32 = arith.constant 0 : i32
    %c0_i32_0 = arith.constant 0 : i32
    %c0_i32_1 = arith.constant 0 : i32
    return %c0_i32, %c0_i32_0 : i32, i32
  }
  func.func @transform_6(%arg0: i32) -> (i32, i32) {
    %c0_i32 = arith.constant 0 : i32
    %c0_i32_0 = arith.constant 0 : i32
    return %c0_i32, %arg0 : i32, i32
  }
}

</mosaic_0001>

<llo_original>
// kernel: tpu_custom_call.1
$region0: #{tpu_custom_call.1}
  #allocation0 [shape = 'u32[]', space=smem, size = 0x4, offset = 0x4, fixed_abs, tag = 'smem constant byte address 0x4 - core index']
  #allocation1 [shape = 'u32[144,128]{1,0:T(1,128)}', space=vmem, size = 0x12000, scoped, tag = 'internal scratch']
  %s0 = inlined_call_operand.vmem [shape: f32[8,3], index: 0, kind: input, shape index: {}]
  %s1 = inlined_call_operand.vmem [shape: f32[3,3], index: 1, kind: input, shape index: {}]
  %s2 = inlined_call_operand.vmem [shape: f32[8,3], index: 2, kind: input, shape index: {}]
  %s3 = inlined_call_operand.vmem [shape: f32[8,2], index: 3, kind: input, shape index: {}]
  %s4 = inlined_call_operand.vmem [shape: f32[8,8], index: 4, kind: input, shape index: {}]
  %s5 = inlined_call_operand.vmem [shape: f32[2,8], index: 5, kind: input, shape index: {}]
  %s6 = inlined_call_operand.hbm [shape: f32[2,8], index: 6, kind: output, shape index: {}]
  %s7 = sld [smem:[#allocation0]]
  $region34: #{tpu_custom_call.1} parent=0
    _
  %s9 = ssub.s32 1, %s7
  %s10 = scalar_select 0, %s9, %s7
  $region1: #{tpu_custom_call.1} parent=0
    #allocation2 [shape = 'u8[1024]{0}', space=vmem, size = 0x400, scoped, tag = 'output window, operand 0, single buffered']
    #allocation3 [shape = 's32[1]{0}', space=sflag, size = 0x4, scoped, tag = 'scoped memory for tpu_custom_call.1']
    %11 = vsyncpa [#allocation3], 0
    // Predicated region
    $region2: #{tpu_custom_call.1} parent=1 // pred_check
      _
    $region3: #{tpu_custom_call.1} parent=1 // pred_check_branch
      %13 = sbr.rel (0) target = $region5
    $region4: #{tpu_custom_call.1} parent=1 // pred_region
      _
    $region5: #{tpu_custom_call.1} parent=1 // pred_fallthru
      _
    // Predicated region
    $region6: #{tpu_custom_call.1} parent=1 // pred_check
      _
    $region7: #{tpu_custom_call.1} parent=1 // pred_check_branch
      %15 = sbr.rel (0) target = $region9
    $region8: #{tpu_custom_call.1} parent=1 // pred_region
      _
    $region9: #{tpu_custom_call.1} parent=1 // pred_fallthru
      _
    // Predicated region
    $region10: #{tpu_custom_call.1} parent=1 // pred_check
      _
    $region11: #{tpu_custom_call.1} parent=1 // pred_check_branch
      %17 = sbr.rel (0) target = $region13
    $region12: #{tpu_custom_call.1} parent=1 // pred_region
      _
    $region13: #{tpu_custom_call.1} parent=1 // pred_fallthru
      _
    // Predicated region
    $region14: #{tpu_custom_call.1} parent=1 // pred_check
      _
    $region15: #{tpu_custom_call.1} parent=1 // pred_check_branch
      %19 = sbr.rel (0) target = $region17
    $region16: #{tpu_custom_call.1} parent=1 // pred_region
      _
    $region17: #{tpu_custom_call.1} parent=1 // pred_fallthru
      _
    // Predicated region
    $region18: #{tpu_custom_call.1} parent=1 // pred_check
      _
    $region19: #{tpu_custom_call.1} parent=1 // pred_check_branch
      %21 = sbr.rel (0) target = $region21
    $region20: #{tpu_custom_call.1} parent=1 // pred_region
      _
    $region21: #{tpu_custom_call.1} parent=1 // pred_fallthru
      _
    // Predicated region
    $region22: #{tpu_custom_call.1} parent=1 // pred_check
      _
    $region23: #{tpu_custom_call.1} parent=1 // pred_check_branch
      %23 = sbr.rel (0) target = $region25
    $region24: #{tpu_custom_call.1} parent=1 // pred_region
      _
    $region25: #{tpu_custom_call.1} parent=1 // pred_fallthru
      _
    %v24 = vld [vmem:[%s0] sm:$0xff]
    %v25 = vld [vmem:[%s1] sm:$0x7]
    %vm26 = vcmask 23552
    %v28 = vsel %vm26, %v25, 0
    %v31 = vsel %vm26, %v24, 0
    %33 = vmatprep.subr.mxu0 0.0
    %34 = vmatpush1.xpose.msra.mxu0 %v31
    %35 = vmatprep.subr.mxu0 0.0
    %36 = vmatpush1.xpose.msra.mxu0 0.0
    %37 = vmatprep.subr.mxu0 0.0
    %38 = vmatpush1.xpose.msra.mxu0 0.0
    %39 = vmatprep.subr.mxu0 0.0
    %40 = vmatpush1.xpose.msra.mxu0 0.0
    %41 = vmatprep.subr.mxu0 0.0
    %42 = vmatpush1.xpose.msra.mxu0 0.0
    %43 = vmatprep.subr.mxu0 0.0
    %44 = vmatpush1.xpose.msra.mxu0 0.0
    %45 = vmatprep.subr.mxu0 0.0
    %46 = vmatpush1.xpose.msra.mxu0 0.0
    %47 = vmatprep.subr.mxu0 0.0
    %48 = vmatpush1.xpose.msra.mxu0 0.0
    %49 = vmatprep.subr.mxu0 0.0
    %50 = vmatpush1.xpose.msra.mxu0 0.0
    %51 = vmatprep.subr.mxu0 0.0
    %52 = vmatpush1.xpose.msra.mxu0 0.0
    %53 = vmatprep.subr.mxu0 0.0
    %54 = vmatpush1.xpose.msra.mxu0 0.0
    %55 = vmatprep.subr.mxu0 0.0
    %56 = vmatpush1.xpose.msra.mxu0 0.0
    %57 = vmatprep.subr.mxu0 0.0
    %58 = vmatpush1.xpose.msra.mxu0 0.0
    %59 = vmatprep.subr.mxu0 0.0
    %60 = vmatpush1.xpose.msra.mxu0 0.0
    %61 = vmatprep.subr.mxu0 0.0
    %62 = vmatpush1.xpose.msra.mxu0 0.0
    %63 = vmatprep.subr.mxu0 0.0
    %64 = vmatpush1.xpose.msra.mxu0 0.0
    %65 = vmatprep.subr.mxu0 0.0
    %66 = vmatpush1.xpose.msra.mxu0 0.0
    %67 = vmatprep.subr.mxu0 0.0
    %68 = vmatpush1.xpose.msra.mxu0 0.0
    %69 = vmatprep.subr.mxu0 0.0
    %70 = vmatpush1.xpose.msra.mxu0 0.0
    %71 = vmatprep.subr.mxu0 0.0
    %72 = vmatpush1.xpose.msra.mxu0 0.0
    %73 = vmatprep.subr.mxu0 0.0
    %74 = vmatpush1.xpose.msra.mxu0 0.0
    %75 = vmatprep.subr.mxu0 0.0
    %76 = vmatpush1.xpose.msra.mxu0 0.0
    %77 = vmatprep.subr.mxu0 0.0
    %78 = vmatpush1.xpose.msra.mxu0 0.0
    %79 = vmatprep.subr.mxu0 0.0
    %80 = vmatpush1.xpose.msra.mxu0 0.0
    %81 = vmatprep.subr.mxu0 0.0
    %82 = vmatpush1.xpose.msra.mxu0 0.0
    %83 = vmatprep.subr.mxu0 0.0
    %84 = vmatpush1.xpose.msra.mxu0 0.0
    %85 = vmatprep.subr.mxu0 0.0
    %86 = vmatpush1.xpose.msra.mxu0 0.0
    %87 = vmatprep.subr.mxu0 0.0
    %88 = vmatpush1.xpose.msra.mxu0 0.0
    %89 = vmatprep.subr.mxu0 0.0
    %90 = vmatpush1.xpose.msra.mxu0 0.0
    %91 = vmatprep.subr.mxu0 0.0
    %92 = vmatpush1.xpose.msra.mxu0 0.0
    %93 = vmatprep.subr.mxu0 0.0
    %94 = vmatpush1.xpose.msra.mxu0 0.0
    %95 = vmatprep.subr.mxu0 0.0
    %96 = vmatpush1.xpose.msra.mxu0 0.0
    %97 = vmatprep.mubr.f32.mxu0 0.0
    %98 = vmatmul.mubr.f32.gmra.mrb[0].mxu0 %v28
    %v99 = vpop.f32.mrb[0].mxu0
    %v100 = vadd.f32 0.0, %v99
    %v101 = vpop.f32.mrb[0].mxu0
    %102 = vdwg.mxu0
    %v103 = vsub.f32 3.1415927, %v100
    %v105 = vrot.slane %v103, 1
    %v107 = vmul.f32 %v103, %v105
    %v108 = vld [vmem:[%s2] sm:$0xff]
    %v109 = vld [vmem:[%s3] sm:$0xff]
    %vm110 = vcmask 15360
    %v112 = vsel %vm110, %v109, 0
    %vm114 = vcmask 1041408
    %v116 = vsel %vm114, %v107, 0
    %118 = vmatprep.subr.mxu0 0.0
    %119 = vmatpush1.msra.mxu0 %v116
    %120 = vmatprep.subr.mxu0 0.0
    %121 = vmatpush1.msra.mxu0 0.0
    %122 = vmatprep.subr.mxu0 0.0
    %123 = vmatpush1.msra.mxu0 0.0
    %124 = vmatprep.subr.mxu0 0.0
    %125 = vmatpush1.msra.mxu0 0.0
    %126 = vmatprep.subr.mxu0 0.0
    %127 = vmatpush1.msra.mxu0 0.0
    %128 = vmatprep.subr.mxu0 0.0
    %129 = vmatpush1.msra.mxu0 0.0
    %130 = vmatprep.subr.mxu0 0.0
    %131 = vmatpush1.msra.mxu0 0.0
    %132 = vmatprep.subr.mxu0 0.0
    %133 = vmatpush1.msra.mxu0 0.0
    %134 = vmatprep.subr.mxu0 0.0
    %135 = vmatpush1.msra.mxu0 0.0
    %136 = vmatprep.subr.mxu0 0.0
    %137 = vmatpush1.msra.mxu0 0.0
    %138 = vmatprep.subr.mxu0 0.0
    %139 = vmatpush1.msra.mxu0 0.0
    %140 = vmatprep.subr.mxu0 0.0
    %141 = vmatpush1.msra.mxu0 0.0
    %142 = vmatprep.subr.mxu0 0.0
    %143 = vmatpush1.msra.mxu0 0.0
    %144 = vmatprep.subr.mxu0 0.0
    %145 = vmatpush1.msra.mxu0 0.0
    %146 = vmatprep.subr.mxu0 0.0
    %147 = vmatpush1.msra.mxu0 0.0
    %148 = vmatprep.subr.mxu0 0.0
    %149 = vmatpush1.msra.mxu0 0.0
    %150 = vmatprep.subr.mxu0 0.0
    %151 = vmatpush1.msra.mxu0 0.0
    %152 = vmatprep.subr.mxu0 0.0
    %153 = vmatpush1.msra.mxu0 0.0
    %154 = vmatprep.subr.mxu0 0.0
    %155 = vmatpush1.msra.mxu0 0.0
    %156 = vmatprep.subr.mxu0 0.0
    %157 = vmatpush1.msra.mxu0 0.0
    %158 = vmatprep.subr.mxu0 0.0
    %159 = vmatpush1.msra.mxu0 0.0
    %160 = vmatprep.subr.mxu0 0.0
    %161 = vmatpush1.msra.mxu0 0.0
    %162 = vmatprep.subr.mxu0 0.0
    %163 = vmatpush1.msra.mxu0 0.0
    %164 = vmatprep.subr.mxu0 0.0
    %165 = vmatpush1.msra.mxu0 0.0
    %166 = vmatprep.subr.mxu0 0.0
    %167 = vmatpush1.msra.mxu0 0.0
    %168 = vmatprep.subr.mxu0 0.0
    %169 = vmatpush1.msra.mxu0 0.0
    %170 = vmatprep.subr.mxu0 0.0
    %171 = vmatpush1.msra.mxu0 0.0
    %172 = vmatprep.subr.mxu0 0.0
    %173 = vmatpush1.msra.mxu0 0.0
    %174 = vmatprep.subr.mxu0 0.0
    %175 = vmatpush1.msra.mxu0 0.0
    %176 = vmatprep.subr.mxu0 0.0
    %177 = vmatpush1.msra.mxu0 0.0
    %178 = vmatprep.subr.mxu0 0.0
    %179 = vmatpush1.msra.mxu0 0.0
    %180 = vmatprep.subr.mxu0 0.0
    %181 = vmatpush1.msra.mxu0 0.0
    %182 = vmatprep.mubr.f32.mxu0 0.0
    %183 = vmatmul.mubr.f32.gmra.mrb[0].mxu0 %v112
    %v184 = vpop.f32.mrb[0].mxu0
    %v185 = vadd.f32 0.0, %v184
    %v186 = vpop.f32.mrb[0].mxu0
    %187 = vdwg.mxu0
    %v189 = vsel %vm26, %v108, 0
    %vm191 = vcmask 1042432
    %v193 = vsel %vm191, %v100, 0
    %195 = vmatprep.subr.mxu0 0.0
    %196 = vmatpush1.msra.mxu0 %v193
    %197 = vmatprep.subr.mxu0 0.0
    %198 = vmatpush1.msra.mxu0 0.0
    %199 = vmatprep.subr.mxu0 0.0
    %200 = vmatpush1.msra.mxu0 0.0
    %201 = vmatprep.subr.mxu0 0.0
    %202 = vmatpush1.msra.mxu0 0.0
    %203 = vmatprep.subr.mxu0 0.0
    %204 = vmatpush1.msra.mxu0 0.0
    %205 = vmatprep.subr.mxu0 0.0
    %206 = vmatpush1.msra.mxu0 0.0
    %207 = vmatprep.subr.mxu0 0.0
    %208 = vmatpush1.msra.mxu0 0.0
    %209 = vmatprep.subr.mxu0 0.0
    %210 = vmatpush1.msra.mxu0 0.0
    %211 = vmatprep.subr.mxu0 0.0
    %212 = vmatpush1.msra.mxu0 0.0
    %213 = vmatprep.subr.mxu0 0.0
    %214 = vmatpush1.msra.mxu0 0.0
    %215 = vmatprep.subr.mxu0 0.0
    %216 = vmatpush1.msra.mxu0 0.0
    %217 = vmatprep.subr.mxu0 0.0
    %218 = vmatpush1.msra.mxu0 0.0
    %219 = vmatprep.subr.mxu0 0.0
    %220 = vmatpush1.msra.mxu0 0.0
    %221 = vmatprep.subr.mxu0 0.0
    %222 = vmatpush1.msra.mxu0 0.0
    %223 = vmatprep.subr.mxu0 0.0
    %224 = vmatpush1.msra.mxu0 0.0
    %225 = vmatprep.subr.mxu0 0.0
    %226 = vmatpush1.msra.mxu0 0.0
    %227 = vmatprep.subr.mxu0 0.0
    %228 = vmatpush1.msra.mxu0 0.0
    %229 = vmatprep.subr.mxu0 0.0
    %230 = vmatpush1.msra.mxu0 0.0
    %231 = vmatprep.subr.mxu0 0.0
    %232 = vmatpush1.msra.mxu0 0.0
    %233 = vmatprep.subr.mxu0 0.0
    %234 = vmatpush1.msra.mxu0 0.0
    %235 = vmatprep.subr.mxu0 0.0
    %236 = vmatpush1.msra.mxu0 0.0
    %237 = vmatprep.subr.mxu0 0.0
    %238 = vmatpush1.msra.mxu0 0.0
    %239 = vmatprep.subr.mxu0 0.0
    %240 = vmatpush1.msra.mxu0 0.0
    %241 = vmatprep.subr.mxu0 0.0
    %242 = vmatpush1.msra.mxu0 0.0
    %243 = vmatprep.subr.mxu0 0.0
    %244 = vmatpush1.msra.mxu0 0.0
    %245 = vmatprep.subr.mxu0 0.0
    %246 = vmatpush1.msra.mxu0 0.0
    %247 = vmatprep.subr.mxu0 0.0
    %248 = vmatpush1.msra.mxu0 0.0
    %249 = vmatprep.subr.mxu0 0.0
    %250 = vmatpush1.msra.mxu0 0.0
    %251 = vmatprep.subr.mxu0 0.0
    %252 = vmatpush1.msra.mxu0 0.0
    %253 = vmatprep.subr.mxu0 0.0
    %254 = vmatpush1.msra.mxu0 0.0
    %255 = vmatprep.subr.mxu0 0.0
    %256 = vmatpush1.msra.mxu0 0.0
    %257 = vmatprep.subr.mxu0 0.0
    %258 = vmatpush1.msra.mxu0 0.0
    %259 = vmatprep.mubr.f32.mxu0 0.0
    %260 = vmatmul.mubr.f32.gmra.mrb[0].mxu0 %v189
    %v261 = vpop.f32.mrb[0].mxu0
    %v262 = vadd.f32 %v185, %v261
    %v263 = vpop.f32.mrb[0].mxu0
    %264 = vdwg.mxu0
    %v265 = vld [vmem:[%s4] sm:$0xff]
    %v266 = vand.u32 2147483647, %v262
    %vm267 = vcmp.le.f32.partialorder %v266, 0.7853982
    %vm268 = vcmp.lt.s32.totalorder %v262, 0
    %v269 = vand.u32 %v262, 2139095040
    %v270 = vshrl.u32 %v269, 23
    %v271 = vsub.s32 %v270, 127
    %v272 = vand.u32 2147483647, %v262
    %v273 = vand.u32 %v272, 8388607
    %v274 = vor.u32 %v273, 8388608
    %v275 = vsub.s32 0, %v274
    %v276 = vadd.s32 %v271, 1
    %vm277 = vcmp.gt.s32.totalorder %v276, 0
    %v278 = vsel %vm277, %v276, 0
    %v279 = vshrl.u32 %v278, 5
    %v280 = vand.u32 %v278, 31
    %v281 = vsub.s32 32, %v280
    %v282 = vshrl.u32 683565275, %v281
    %v283 = vshll.u32 683565275, %v280
    %v284 = vshrl.u32 2475754826, %v281
    %v285 = vor.u32 %v283, %v284
    %v286 = vshll.u32 2475754826, %v280
    %v287 = vshrl.u32 2131351028, %v281
    %v288 = vor.u32 %v286, %v287
    %v289 = vshll.u32 2131351028, %v280
    %v290 = vshrl.u32 2102212464, %v281
    %v291 = vor.u32 %v289, %v290
    %v292 = vshll.u32 2102212464, %v280
    %v293 = vshrl.u32 920167782, %v281
    %v294 = vor.u32 %v292, %v293
    %v295 = vshll.u32 920167782, %v280
    %v296 = vshrl.u32 1326507024, %v281
    %v297 = vor.u32 %v295, %v296
    %vm298 = vcmp.lt.s32.totalorder %v279, 1
    %vm299 = vcmp.lt.s32.totalorder %v279, 2
    %vm300 = vcmp.lt.s32.totalorder %v279, 3
    %vm301 = vcmp.lt.s32.totalorder %v279, 4
    %v302 = vsel %vm298, %v282, %v285
    %v303 = vsel %vm301, %v291, 2102212464
    %v304 = vsel %vm300, %v288, %v303
    %v305 = vsel %vm299, %v302, %v304
    %v306 = vsel %vm298, %v285, %v288
    %v307 = vsel %vm301, %v294, 920167782
    %v308 = vsel %vm300, %v291, %v307
    %v309 = vsel %vm299, %v306, %v308
    %v310 = vsel %vm298, %v288, %v291
    %v311 = vsel %vm301, %v297, 1326507024
    %v312 = vsel %vm300, %v294, %v311
    %v313 = vsel %vm299, %v310, %v312
    %v314 = vshll.u32 %v274, 8
    %v315 = vmul.u32.u64.compose %v314, %v313
    %v316 = vextract.low.u32 %v315
    %v317 = vextract.high.u32 %v315
    %v318 = vmul.u32.u64.compose %v314, %v309
    %v319 = vextract.low.u32 %v318
    %v320 = vextract.high.u32 %v318
    %v321 = vmul.u32 %v314, %v305
    %v322 = vadd.s32 %v317, %v319
    %vm323 = vc.u32 %v317, %v319
    %v324 = vadd.s32 %v320, 1
    %v325 = vsel %vm323, %v324, %v320
    %v326 = vadd.s32 %v321, %v325
    %v327 = vadd.s32 %v326, 536870912
    %v328 = vshrl.u32 %v327, 30
    %v329 = vshll.u32 %v328, 30
    %v330 = vsub.s32 %v326, %v329
    %vm331 = vcmp.lt.s32.totalorder %v330, 0
    %v332 = vsub.s32 0, %v330
    %v333 = vsel %vm331, %v332, %v330
    %v334 = vclz %v333
    %v335 = vsub.s32 %v334, 2
    %vm336 = vcmp.gt.s32.totalorder 0, %v335
    %v337 = vsel %vm336, 0, %v335
    %v338 = vsub.s32 32, %v337
    %v339 = vshll.u32 %v330, %v337
    %v340 = vshrl.u32 %v322, %v338
    %v341 = vor.u32 %v339, %v340
    %v342 = vsub.s32 4294967266, %v337
    %v343 = vadd.s32 %v342, 127
    %v344 = vshll.u32 %v343, 23
    %v345 = vor.u32 4788187, %v344
    %v346 = vand.u32 2147483647, %v345
    %v348 = vcvt.s32.f32 %v341
    %v349 = vmul.f32 %v348, %v346
    %v350 = vxor.u32 %v349, 2147483648
    %v351 = vsel %vm268, %v350, %v349
    %v352 = vsub.s32 4, %v328
    %v353 = vsel %vm268, %v352, %v328
    %v354 = vsel %vm267, %v262, %v351
    %v355 = vsel %vm267, 0, %v353
    %v356 = vcosq.f32.pop %v354
    %v357 = vsinq.f32.pop %v354
    %vm358 = vweird.f32 %v262
    %v359 = vand.u32 %v355, 3
    %vm360 = vcmp.lt.s32.totalorder %v359, 2
    %vm361 = vcmp.eq.s32.totalorder %v359, 0
    %v362 = vxor.u32 %v357, 2147483648
    %v363 = vsel %vm361, %v356, %v362
    %vm364 = vcmp.eq.s32.totalorder %v359, 2
    %v365 = vxor.u32 %v356, 2147483648
    %v366 = vsel %vm364, %v365, %v357
    %v367 = vsel %vm360, %v363, %v366
    %v368 = vsel %vm358, nan, %v367
    %vm369 = vcmask 64512
    %v371 = vsel %vm369, %v265, 0
    %373 = vmatprep.subr.mxu0 0.0
    %374 = vmatpush1.msra.mxu0 %v368
    %375 = vmatprep.subr.mxu0 0.0
    %376 = vmatpush1.msra.mxu0 0.0
    %377 = vmatprep.subr.mxu0 0.0
    %378 = vmatpush1.msra.mxu0 0.0
    %379 = vmatprep.subr.mxu0 0.0
    %380 = vmatpush1.msra.mxu0 0.0
    %381 = vmatprep.subr.mxu0 0.0
    %382 = vmatpush1.msra.mxu0 0.0
    %383 = vmatprep.subr.mxu0 0.0
    %384 = vmatpush1.msra.mxu0 0.0
    %385 = vmatprep.subr.mxu0 0.0
    %386 = vmatpush1.msra.mxu0 0.0
    %387 = vmatprep.subr.mxu0 0.0
    %388 = vmatpush1.msra.mxu0 0.0
    %389 = vmatprep.subr.mxu0 0.0
    %390 = vmatpush1.msra.mxu0 0.0
    %391 = vmatprep.subr.mxu0 0.0
    %392 = vmatpush1.msra.mxu0 0.0
    %393 = vmatprep.subr.mxu0 0.0
    %394 = vmatpush1.msra.mxu0 0.0
    %395 = vmatprep.subr.mxu0 0.0
    %396 = vmatpush1.msra.mxu0 0.0
    %397 = vmatprep.subr.mxu0 0.0
    %398 = vmatpush1.msra.mxu0 0.0
    %399 = vmatprep.subr.mxu0 0.0
    %400 = vmatpush1.msra.mxu0 0.0
    %401 = vmatprep.subr.mxu0 0.0
    %402 = vmatpush1.msra.mxu0 0.0
    %403 = vmatprep.subr.mxu0 0.0
    %404 = vmatpush1.msra.mxu0 0.0
    %405 = vmatprep.subr.mxu0 0.0
    %406 = vmatpush1.msra.mxu0 0.0
    %407 = vmatprep.subr.mxu0 0.0
    %408 = vmatpush1.msra.mxu0 0.0
    %409 = vmatprep.subr.mxu0 0.0
    %410 = vmatpush1.msra.mxu0 0.0
    %411 = vmatprep.subr.mxu0 0.0
    %412 = vmatpush1.msra.mxu0 0.0
    %413 = vmatprep.subr.mxu0 0.0
    %414 = vmatpush1.msra.mxu0 0.0
    %415 = vmatprep.subr.mxu0 0.0
    %416 = vmatpush1.msra.mxu0 0.0
    %417 = vmatprep.subr.mxu0 0.0
    %418 = vmatpush1.msra.mxu0 0.0
    %419 = vmatprep.subr.mxu0 0.0
    %420 = vmatpush1.msra.mxu0 0.0
    %421 = vmatprep.subr.mxu0 0.0
    %422 = vmatpush1.msra.mxu0 0.0
    %423 = vmatprep.subr.mxu0 0.0
    %424 = vmatpush1.msra.mxu0 0.0
    %425 = vmatprep.subr.mxu0 0.0
    %426 = vmatpush1.msra.mxu0 0.0
    %427 = vmatprep.subr.mxu0 0.0
    %428 = vmatpush1.msra.mxu0 0.0
    %429 = vmatprep.subr.mxu0 0.0
    %430 = vmatpush1.msra.mxu0 0.0
    %431 = vmatprep.subr.mxu0 0.0
    %432 = vmatpush1.msra.mxu0 0.0
    %433 = vmatprep.subr.mxu0 0.0
    %434 = vmatpush1.msra.mxu0 0.0
    %435 = vmatprep.subr.mxu0 0.0
    %436 = vmatpush1.msra.mxu0 0.0
    %437 = vmatprep.mubr.f32.mxu0 0.0
    %438 = vmatmul.mubr.f32.gmra.mrb[0].mxu0 %v371
    %v439 = vpop.f32.mrb[0].mxu0
    %v440 = vadd.f32 0.0, %v439
    %v441 = vpop.f32.mrb[0].mxu0
    %442 = vdwg.mxu0
    %v443 = vmul.f32 %v440, %v440
    %v444 = vand.u32 2147483647, %v262
    %vm445 = vcmp.le.f32.partialorder %v444, 0.7853982
    %vm446 = vcmp.lt.s32.totalorder %v262, 0
    %v447 = vand.u32 %v262, 2139095040
    %v448 = vshrl.u32 %v447, 23
    %v449 = vsub.s32 %v448, 127
    %v450 = vand.u32 2147483647, %v262
    %v451 = vand.u32 %v450, 8388607
    %v452 = vor.u32 %v451, 8388608
    %v453 = vsub.s32 0, %v452
    %v454 = vadd.s32 %v449, 1
    %vm455 = vcmp.gt.s32.totalorder %v454, 0
    %v456 = vsel %vm455, %v454, 0
    %v457 = vshrl.u32 %v456, 5
    %v458 = vand.u32 %v456, 31
    %v459 = vsub.s32 32, %v458
    %v460 = vshrl.u32 683565275, %v459
    %v461 = vshll.u32 683565275, %v458
    %v462 = vshrl.u32 2475754826, %v459
    %v463 = vor.u32 %v461, %v462
    %v464 = vshll.u32 2475754826, %v458
    %v465 = vshrl.u32 2131351028, %v459
    %v466 = vor.u32 %v464, %v465
    %v467 = vshll.u32 2131351028, %v458
    %v468 = vshrl.u32 2102212464, %v459
    %v469 = vor.u32 %v467, %v468
    %v470 = vshll.u32 2102212464, %v458
    %v471 = vshrl.u32 920167782, %v459
    %v472 = vor.u32 %v470, %v471
    %v473 = vshll.u32 920167782, %v458
    %v474 = vshrl.u32 1326507024, %v459
    %v475 = vor.u32 %v473, %v474
    %vm476 = vcmp.lt.s32.totalorder %v457, 1
    %vm477 = vcmp.lt.s32.totalorder %v457, 2
    %vm478 = vcmp.lt.s32.totalorder %v457, 3
    %vm479 = vcmp.lt.s32.totalorder %v457, 4
    %v480 = vsel %vm476, %v460, %v463
    %v481 = vsel %vm479, %v469, 2102212464
    %v482 = vsel %vm478, %v466, %v481
    %v483 = vsel %vm477, %v480, %v482
    %v484 = vsel %vm476, %v463, %v466
    %v485 = vsel %vm479, %v472, 920167782
    %v486 = vsel %vm478, %v469, %v485
    %v487 = vsel %vm477, %v484, %v486
    %v488 = vsel %vm476, %v466, %v469
    %v489 = vsel %vm479, %v475, 1326507024
    %v490 = vsel %vm478, %v472, %v489
    %v491 = vsel %vm477, %v488, %v490
    %v492 = vshll.u32 %v452, 8
    %v493 = vmul.u32.u64.compose %v492, %v491
    %v494 = vextract.low.u32 %v493
    %v495 = vextract.high.u32 %v493
    %v496 = vmul.u32.u64.compose %v492, %v487
    %v497 = vextract.low.u32 %v496
    %v498 = vextract.high.u32 %v496
    %v499 = vmul.u32 %v492, %v483
    %v500 = vadd.s32 %v495, %v497
    %vm501 = vc.u32 %v495, %v497
    %v502 = vadd.s32 %v498, 1
    %v503 = vsel %vm501, %v502, %v498
    %v504 = vadd.s32 %v499, %v503
    %v505 = vadd.s32 %v504, 536870912
    %v506 = vshrl.u32 %v505, 30
    %v507 = vshll.u32 %v506, 30
    %v508 = vsub.s32 %v504, %v507
    %vm509 = vcmp.lt.s32.totalorder %v508, 0
    %v510 = vsub.s32 0, %v508
    %v511 = vsel %vm509, %v510, %v508
    %v512 = vclz %v511
    %v513 = vsub.s32 %v512, 2
    %vm514 = vcmp.gt.s32.totalorder 0, %v513
    %v515 = vsel %vm514, 0, %v513
    %v516 = vsub.s32 32, %v515
    %v517 = vshll.u32 %v508, %v515
    %v518 = vshrl.u32 %v500, %v516
    %v519 = vor.u32 %v517, %v518
    %v520 = vsub.s32 4294967266, %v515
    %v521 = vadd.s32 %v520, 127
    %v522 = vshll.u32 %v521, 23
    %v523 = vor.u32 4788187, %v522
    %v524 = vand.u32 2147483647, %v523
    %v526 = vcvt.s32.f32 %v519
    %v527 = vmul.f32 %v526, %v524
    %v528 = vxor.u32 %v527, 2147483648
    %v529 = vsel %vm446, %v528, %v527
    %v530 = vsub.s32 4, %v506
    %v531 = vsel %vm446, %v530, %v506
    %v532 = vsel %vm445, %v262, %v529
    %v533 = vsel %vm445, 0, %v531
    %v534 = vcosq.f32.pop %v532
    %v535 = vsinq.f32.pop %v532
    %vm536 = vweird.f32 %v262
    %v537 = vadd.s32 %v533, 3
    %v538 = vand.u32 %v537, 3
    %vm539 = vcmp.lt.s32.totalorder %v538, 2
    %vm540 = vcmp.eq.s32.totalorder %v538, 0
    %v541 = vxor.u32 %v535, 2147483648
    %v542 = vsel %vm540, %v534, %v541
    %vm543 = vcmp.eq.s32.totalorder %v538, 2
    %v544 = vxor.u32 %v534, 2147483648
    %v545 = vsel %vm543, %v544, %v535
    %v546 = vsel %vm539, %v542, %v545
    %v547 = vsel %vm536, nan, %v546
    %548 = vmatprep.subr.mxu0 0.0
    %549 = vmatpush1.msra.mxu0 %v547
    %550 = vmatprep.subr.mxu0 0.0
    %551 = vmatpush1.msra.mxu0 0.0
    %552 = vmatprep.subr.mxu0 0.0
    %553 = vmatpush1.msra.mxu0 0.0
    %554 = vmatprep.subr.mxu0 0.0
    %555 = vmatpush1.msra.mxu0 0.0
    %556 = vmatprep.subr.mxu0 0.0
    %557 = vmatpush1.msra.mxu0 0.0
    %558 = vmatprep.subr.mxu0 0.0
    %559 = vmatpush1.msra.mxu0 0.0
    %560 = vmatprep.subr.mxu0 0.0
    %561 = vmatpush1.msra.mxu0 0.0
    %562 = vmatprep.subr.mxu0 0.0
    %563 = vmatpush1.msra.mxu0 0.0
    %564 = vmatprep.subr.mxu0 0.0
    %565 = vmatpush1.msra.mxu0 0.0
    %566 = vmatprep.subr.mxu0 0.0
    %567 = vmatpush1.msra.mxu0 0.0
    %568 = vmatprep.subr.mxu0 0.0
    %569 = vmatpush1.msra.mxu0 0.0
    %570 = vmatprep.subr.mxu0 0.0
    %571 = vmatpush1.msra.mxu0 0.0
    %572 = vmatprep.subr.mxu0 0.0
    %573 = vmatpush1.msra.mxu0 0.0
    %574 = vmatprep.subr.mxu0 0.0
    %575 = vmatpush1.msra.mxu0 0.0
    %576 = vmatprep.subr.mxu0 0.0
    %577 = vmatpush1.msra.mxu0 0.0
    %578 = vmatprep.subr.mxu0 0.0
    %579 = vmatpush1.msra.mxu0 0.0
    %580 = vmatprep.subr.mxu0 0.0
    %581 = vmatpush1.msra.mxu0 0.0
    %582 = vmatprep.subr.mxu0 0.0
    %583 = vmatpush1.msra.mxu0 0.0
    %584 = vmatprep.subr.mxu0 0.0
    %585 = vmatpush1.msra.mxu0 0.0
    %586 = vmatprep.subr.mxu0 0.0
    %587 = vmatpush1.msra.mxu0 0.0
    %588 = vmatprep.subr.mxu0 0.0
    %589 = vmatpush1.msra.mxu0 0.0
    %590 = vmatprep.subr.mxu0 0.0
    %591 = vmatpush1.msra.mxu0 0.0
    %592 = vmatprep.subr.mxu0 0.0
    %593 = vmatpush1.msra.mxu0 0.0
    %594 = vmatprep.subr.mxu0 0.0
    %595 = vmatpush1.msra.mxu0 0.0
    %596 = vmatprep.subr.mxu0 0.0
    %597 = vmatpush1.msra.mxu0 0.0
    %598 = vmatprep.subr.mxu0 0.0
    %599 = vmatpush1.msra.mxu0 0.0
    %600 = vmatprep.subr.mxu0 0.0
    %601 = vmatpush1.msra.mxu0 0.0
    %602 = vmatprep.subr.mxu0 0.0
    %603 = vmatpush1.msra.mxu0 0.0
    %604 = vmatprep.subr.mxu0 0.0
    %605 = vmatpush1.msra.mxu0 0.0
    %606 = vmatprep.subr.mxu0 0.0
    %607 = vmatpush1.msra.mxu0 0.0
    %608 = vmatprep.subr.mxu0 0.0
    %609 = vmatpush1.msra.mxu0 0.0
    %610 = vmatprep.subr.mxu0 0.0
    %611 = vmatpush1.msra.mxu0 0.0
    %612 = vmatprep.mubr.f32.mxu0 0.0
    %613 = vmatmul.mubr.f32.gmra.mrb[0].mxu0 %v371
    %v614 = vpop.f32.mrb[0].mxu0
    %v615 = vadd.f32 0.0, %v614
    %v616 = vpop.f32.mrb[0].mxu0
    %617 = vdwg.mxu0
    %v618 = vmul.f32 %v615, %v615
    %v619 = vadd.f32 %v443, %v618
    %v620 = vld [vmem:[%s5] sm:$0x3]
    %v622 = vsel %vm369, %v620, 0
    %624 = vmatprep.subr.mxu0 0.0
    %625 = vmatpush1.msra.mxu0 %v619
    %626 = vmatprep.subr.mxu0 0.0
    %627 = vmatpush1.msra.mxu0 0.0
    %628 = vmatprep.subr.mxu0 0.0
    %629 = vmatpush1.msra.mxu0 0.0
    %630 = vmatprep.subr.mxu0 0.0
    %631 = vmatpush1.msra.mxu0 0.0
    %632 = vmatprep.subr.mxu0 0.0
    %633 = vmatpush1.msra.mxu0 0.0
    %634 = vmatprep.subr.mxu0 0.0
    %635 = vmatpush1.msra.mxu0 0.0
    %636 = vmatprep.subr.mxu0 0.0
    %637 = vmatpush1.msra.mxu0 0.0
    %638 = vmatprep.subr.mxu0 0.0
    %639 = vmatpush1.msra.mxu0 0.0
    %640 = vmatprep.subr.mxu0 0.0
    %641 = vmatpush1.msra.mxu0 0.0
    %642 = vmatprep.subr.mxu0 0.0
    %643 = vmatpush1.msra.mxu0 0.0
    %644 = vmatprep.subr.mxu0 0.0
    %645 = vmatpush1.msra.mxu0 0.0
    %646 = vmatprep.subr.mxu0 0.0
    %647 = vmatpush1.msra.mxu0 0.0
    %648 = vmatprep.subr.mxu0 0.0
    %649 = vmatpush1.msra.mxu0 0.0
    %650 = vmatprep.subr.mxu0 0.0
    %651 = vmatpush1.msra.mxu0 0.0
    %652 = vmatprep.subr.mxu0 0.0
    %653 = vmatpush1.msra.mxu0 0.0
    %654 = vmatprep.subr.mxu0 0.0
    %655 = vmatpush1.msra.mxu0 0.0
    %656 = vmatprep.subr.mxu0 0.0
    %657 = vmatpush1.msra.mxu0 0.0
    %658 = vmatprep.subr.mxu0 0.0
    %659 = vmatpush1.msra.mxu0 0.0
    %660 = vmatprep.subr.mxu0 0.0
    %661 = vmatpush1.msra.mxu0 0.0
    %662 = vmatprep.subr.mxu0 0.0
    %663 = vmatpush1.msra.mxu0 0.0
    %664 = vmatprep.subr.mxu0 0.0
    %665 = vmatpush1.msra.mxu0 0.0
    %666 = vmatprep.subr.mxu0 0.0
    %667 = vmatpush1.msra.mxu0 0.0
    %668 = vmatprep.subr.mxu0 0.0
    %669 = vmatpush1.msra.mxu0 0.0
    %670 = vmatprep.subr.mxu0 0.0
    %671 = vmatpush1.msra.mxu0 0.0
    %672 = vmatprep.subr.mxu0 0.0
    %673 = vmatpush1.msra.mxu0 0.0
    %674 = vmatprep.subr.mxu0 0.0
    %675 = vmatpush1.msra.mxu0 0.0
    %676 = vmatprep.subr.mxu0 0.0
    %677 = vmatpush1.msra.mxu0 0.0
    %678 = vmatprep.subr.mxu0 0.0
    %679 = vmatpush1.msra.mxu0 0.0
    %680 = vmatprep.subr.mxu0 0.0
    %681 = vmatpush1.msra.mxu0 0.0
    %682 = vmatprep.subr.mxu0 0.0
    %683 = vmatpush1.msra.mxu0 0.0
    %684 = vmatprep.subr.mxu0 0.0
    %685 = vmatpush1.msra.mxu0 0.0
    %686 = vmatprep.subr.mxu0 0.0
    %687 = vmatpush1.msra.mxu0 0.0
    %688 = vmatprep.mubr.f32.mxu0 0.0
    %689 = vmatmul.mubr.f32.gmra.mrb[0].mxu0 %v622
    %v690 = vpop.f32.mrb[0].mxu0
    %v691 = vadd.f32 0.0, %v690
    %v692 = vpop.f32.mrb[0].mxu0
    %693 = vdwg.mxu0
    %vm694 = vcmask 58368
    %695 = vst.msk [vmem:[#allocation2] sm:$0x3] %vm694, %v691
    // Predicated region
    $region26: #{tpu_custom_call.1} parent=1 // pred_check
      _
    $region27: #{tpu_custom_call.1} parent=1 // pred_check_branch
      %697 = sbr.rel (0) target = $region29
    $region28: #{tpu_custom_call.1} parent=1 // pred_region
      %s699 = ssub.s32 32, 32
      %700 = vsyncadd [#allocation3], %s699
      %s702 = sshll.u32 [#allocation2], 4
      %s703 = int_to_ptr.vmem [resolvable:$true] %s702
      %705 = dma.vmem_to_hbm [thread:$0]  %s703, 32, %s6, [#allocation3]
    $region29: #{tpu_custom_call.1} parent=1 // pred_fallthru
      _
    // Predicated region
    $region30: #{tpu_custom_call.1} parent=1 // pred_check
      _
    $region31: #{tpu_custom_call.1} parent=1 // pred_check_branch
      %707 = sbr.rel (0) target = $region33
    $region32: #{tpu_custom_call.1} parent=1 // pred_region
      %708 = dma.done [#allocation3], 32
    $region33: #{tpu_custom_call.1} parent=1 // pred_fallthru
      _
    %709 = vsyncpa [#allocation3], 1

</llo_original>
